<compile_context>
chip_gen: v7x
topology: tpu7x:2x2x1
jax: 0.10.0
libtpu: 0.0.40
codegen_flags: <defaults>
</compile_context>

<pallas_src>
import functools
import math

import jax
import jax.numpy as jnp
from jax.experimental import pallas as pl
from jax.experimental.pallas import tpu as pltpu


# ------------------------------- utilities ---------------------------------

def _round_up(x, m):
    return ((x + m - 1) // m) * m


def _vmem_limit_bytes():
    """Generation-aware VMEM budget (v5e/v6e: 128 MiB, v7x: 64 MiB) minus headroom."""
    try:
        cap = int(pltpu.get_tpu_info().vmem_capacity_bytes)
    except Exception:  # pragma: no cover - conservative fallback
        cap = 64 * 1024 * 1024
    return int(cap * 0.85)


# ------------------------------- kernel body --------------------------------

def _layernorm_rows(x, gamma, beta, eps):
    """Numerically stable LayerNorm over the last dim (centered variance)."""
    mu = jnp.mean(x, axis=-1, keepdims=True)
    xc = x - mu
    var = jnp.mean(xc * xc, axis=-1, keepdims=True)
    return xc * jax.lax.rsqrt(var + eps) * gamma + beta


def _prenorm_kernel(x_ref, g_ref, b_ref, *rest, eps, fn):
    """One row-tile:  y = fn(LayerNorm(x_tile))  (fn optional / row-wise)."""
    o_ref = rest[-1]
    p_refs = rest[:-1]
    x = x_ref[...].astype(jnp.float32)                 # (TM, D) f32 statistics
    xn = _layernorm_rows(x, g_ref[...], b_ref[...], eps)
    if fn is None:
        y = xn
    else:
        y = fn(xn, *[r[...] for r in p_refs])          # fused, no HBM round trip
    o_ref[...] = y.astype(o_ref.dtype)


# --------------------------------- wrapper ----------------------------------

def prenorm(x, gamma, beta, *fn_params, fn=None, out_dim=None, eps=1e-5,
            row_tile=None, out_dtype=None):
    """PreNorm.forward as a single Pallas kernel.

    x: (..., D).  gamma/beta: (D,) LayerNorm affine parameters.
    If `fn` is given it must be row-wise: fn(xn_tile, *fn_param_arrays) maps a
    (rows, D) f32 block to a (rows, out_dim) block; it is traced *inside* the
    kernel (fused).  If fn is None the kernel returns LayerNorm(x).
    fn_params must be 2-D arrays (weights already in their final dtype --
    cast them once at load time, not per call).
    """
    orig_shape = x.shape
    D = int(orig_shape[-1])
    M = int(math.prod(orig_shape[:-1])) if len(orig_shape) > 1 else 1
    if out_dim is None:
        if fn is not None:
            raise ValueError("out_dim is required when fn is given")
        out_dim = D
    out_dtype = x.dtype if out_dtype is None else out_dtype

    g2 = jnp.asarray(gamma, jnp.float32).reshape(1, D)
    b2 = jnp.asarray(beta, jnp.float32).reshape(1, D)
    fn_params = tuple(fn_params)

    # Row-tile: multiple of 8 sublanes, sized from the generation's VMEM budget
    # so parameter DMA is amortized over many rows per grid step.
    vmem = _vmem_limit_bytes()
    fixed = 2 * sum(int(p.size) * p.dtype.itemsize
                    for p in ((g2, b2) + fn_params))        # double-buffered params
    per_row = 2 * (D + out_dim) * 4                          # double-buffered in/out rows
    budget = max(vmem // 2 - fixed, 1 << 20)                 # keep half VMEM headroom
    if row_tile is None:
        tm = max(8, (min(1024, budget // per_row) // 8) * 8)
    else:
        tm = _round_up(int(row_tile), 8)
    tm = min(tm, _round_up(M, 8))

    # Pad rows to a whole number of tiles (padded rows are sliced off below).
    Mp = _round_up(M, tm)
    x2 = x.reshape(M, D)
    if Mp != M:
        x2 = jnp.pad(x2, ((0, Mp - M), (0, 0)))

    in_specs = [
        pl.BlockSpec((tm, D), lambda i: (i, 0)),      # x row tile
        pl.BlockSpec((1, D), lambda i: (0, 0)),       # gamma (resident)
        pl.BlockSpec((1, D), lambda i: (0, 0)),       # beta  (resident)
    ]
    for p in fn_params:                                # fn weights: full, resident
        in_specs.append(pl.BlockSpec(p.shape, lambda i, nd=p.ndim: (0,) * nd))

    kern = functools.partial(_prenorm_kernel, eps=float(eps), fn=fn)
    out = pl.pallas_call(
        kern,
        out_shape=jax.ShapeDtypeStruct((Mp, out_dim), out_dtype),
        grid=(pl.cdiv(Mp, tm),),
        in_specs=in_specs,
        out_specs=pl.BlockSpec((tm, out_dim), lambda i: (i, 0)),
        compiler_params=pltpu.CompilerParams(
            dimension_semantics=("parallel",),
            vmem_limit_bytes=vmem),
    )(x2, g2, b2, *fn_params)

    out = out[:M]
    return out.reshape(orig_shape[:-1] + (out_dim,))


class PreNorm:
    """JAX/Pallas port of the PyTorch PreNorm module: fn(LayerNorm(x))."""

    def __init__(self, dim, fn, fn_params=(), fused=False, out_dim=None, eps=1e-5):
        self.dim = dim
        self.gamma = jnp.ones((dim,), jnp.float32)    # nn.LayerNorm init
        self.beta = jnp.zeros((dim,), jnp.float32)
        self.fn = fn
        self.fn_params = tuple(fn_params)
        self.fused = fused
        self.out_dim = out_dim
        self.eps = eps

    # TODO(synk): kwargs forwarded to fn must be closure-captured (static) in
    # the fused path; arbitrary runtime kwargs are only supported unfused.
    def __call__(self, x):
        if self.fused:
            return prenorm(x, self.gamma, self.beta, *self.fn_params,
                           fn=self.fn, out_dim=self.out_dim, eps=self.eps)
        xn = prenorm(x, self.gamma, self.beta, eps=self.eps)   # Pallas LayerNorm
        return self.fn(xn, *self.fn_params)                    # fn outside kernel


# ----------------------------------- main ------------------------------------

if __name__ == "__main__":
    # Small shapes consistent with the module's typical use in the transformer:
    # x: (batch=2, seq=8, dim=32); fn = Linear(32 -> 64) + GELU (row-wise).
    B, N, D, H = 2, 8, 32, 64

    key = jax.random.PRNGKey(0)
    kx, kg, kb, kw, kwb = jax.random.split(key, 5)
    x = jax.random.normal(kx, (B, N, D), dtype=jnp.float32)
    gamma = 1.0 + 0.1 * jax.random.normal(kg, (D,), dtype=jnp.float32)
    beta = 0.1 * jax.random.normal(kb, (D,), dtype=jnp.float32)
    # fn weights prepared ONCE here (hoisted out of the forward call).
    w = (0.05 * jax.random.normal(kw, (D, H))).astype(jnp.float32)
    wb = (0.05 * jax.random.normal(kwb, (1, H))).astype(jnp.float32)

    def fn(xn, w, wb):  # the function PreNorm wraps (row-wise -> fusable)
        h = jnp.dot(xn, w, preferred_element_type=jnp.float32,
                    precision=jax.lax.Precision.HIGHEST) + wb
        return jax.nn.gelu(h, approximate=True)

    # Fused PreNorm block (LayerNorm + fn in one kernel, no HBM round trip).
    block = PreNorm(D, fn, fn_params=(w, wb), fused=True, out_dim=H)
    block.gamma, block.beta = gamma, beta
    y_fused = block(x)

    # Norm-only path (kernel output = LayerNorm(x); fn applied in plain JAX).
    block_unfused = PreNorm(D, fn, fn_params=(w, wb), fused=False)
    block_unfused.gamma, block_unfused.beta = gamma, beta
    y_unfused = block_unfused(x)

    jax.block_until_ready((y_fused, y_unfused))

    # Pure-JAX reference of the module's forward pass.
    mu = jnp.mean(x, axis=-1, keepdims=True)
    var = jnp.mean((x - mu) ** 2, axis=-1, keepdims=True)
    xn_ref = (x - mu) * jax.lax.rsqrt(var + 1e-5) * gamma + beta
    y_ref = fn(xn_ref, w, wb)

    assert y_fused.shape == (B, N, H) and y_unfused.shape == (B, N, H)
    assert bool(jnp.all(jnp.isfinite(y_fused)))
    assert jnp.allclose(y_fused, y_ref, atol=1e-3, rtol=1e-3)
    assert jnp.allclose(y_unfused, y_ref, atol=1e-3, rtol=1e-3)
    print("KERNEL_OK")
</pallas_src>

<mosaic_0001>
module attributes {stable_mosaic.version = 11 : i64} {
  func.func @_prenorm_kernel(%arg0: i32, %arg1: memref<16x32xf32, #tpu.memory_space<vmem>>, %arg2: memref<1x32xf32, #tpu.memory_space<vmem>>, %arg3: memref<1x32xf32, #tpu.memory_space<vmem>>, %arg4: memref<32x64xf32, #tpu.memory_space<vmem>>, %arg5: memref<1x64xf32, #tpu.memory_space<vmem>>, %arg6: memref<16x64xf32, #tpu.memory_space<vmem>>) attributes {dimension_semantics = [#tpu.dimension_semantics<parallel>], iteration_bounds = array<i64: 1>, scalar_prefetch = 0 : i64, scratch_operands = 0 : i64, tpu.core_type = #tpu.core_type<tc>, window_params = [{transform_indices = @transform_0, window_bounds = array<i64: 16, 32>}, {pipeline_mode = #tpu.pipeline_mode<synchronous>, transform_indices = @transform_1, window_bounds = array<i64: 1, 32>}, {pipeline_mode = #tpu.pipeline_mode<synchronous>, transform_indices = @transform_2, window_bounds = array<i64: 1, 32>}, {pipeline_mode = #tpu.pipeline_mode<synchronous>, transform_indices = @transform_3, window_bounds = array<i64: 32, 64>}, {pipeline_mode = #tpu.pipeline_mode<synchronous>, transform_indices = @transform_4, window_bounds = array<i64: 1, 64>}, {transform_indices = @transform_5, window_bounds = array<i64: 16, 64>}]} {
    %c0 = arith.constant 0 : index
    %c0_0 = arith.constant 0 : index
    %0 = vector.load %arg1[%c0, %c0_0] : memref<16x32xf32, #tpu.memory_space<vmem>>, vector<16x32xf32>
    %c0_1 = arith.constant 0 : index
    %c0_2 = arith.constant 0 : index
    %1 = vector.load %arg2[%c0_1, %c0_2] : memref<1x32xf32, #tpu.memory_space<vmem>>, vector<1x32xf32>
    %c0_3 = arith.constant 0 : index
    %c0_4 = arith.constant 0 : index
    %2 = vector.load %arg3[%c0_3, %c0_4] : memref<1x32xf32, #tpu.memory_space<vmem>>, vector<1x32xf32>
    %cst = arith.constant dense<0.000000e+00> : vector<16xf32>
    %3 = vector.multi_reduction <add>, %0, %cst [1] : vector<16x32xf32> to vector<16xf32>
    %4 = vector.shape_cast %3 : vector<16xf32> to vector<16x1xf32>
    %cst_5 = arith.constant 3.200000e+01 : f32
    %5 = vector.broadcast %cst_5 : f32 to vector<16x1xf32>
    %6 = arith.divf %4, %5 : vector<16x1xf32>
    %7 = vector.broadcast %6 : vector<16x1xf32> to vector<16x32xf32>
    %8 = arith.subf %0, %7 : vector<16x32xf32>
    %9 = arith.mulf %8, %8 : vector<16x32xf32>
    %cst_6 = arith.constant dense<0.000000e+00> : vector<16xf32>
    %10 = vector.multi_reduction <add>, %9, %cst_6 [1] : vector<16x32xf32> to vector<16xf32>
    %11 = vector.shape_cast %10 : vector<16xf32> to vector<16x1xf32>
    %cst_7 = arith.constant 3.200000e+01 : f32
    %12 = vector.broadcast %cst_7 : f32 to vector<16x1xf32>
    %13 = arith.divf %11, %12 : vector<16x1xf32>
    %cst_8 = arith.constant 9.99999974E-6 : f32
    %14 = vector.broadcast %cst_8 : f32 to vector<16x1xf32>
    %15 = arith.addf %13, %14 : vector<16x1xf32>
    %16 = math.rsqrt %15 : vector<16x1xf32>
    %17 = vector.broadcast %16 : vector<16x1xf32> to vector<16x32xf32>
    %18 = arith.mulf %8, %17 : vector<16x32xf32>
    %19 = vector.broadcast %1 : vector<1x32xf32> to vector<16x32xf32>
    %20 = arith.mulf %18, %19 : vector<16x32xf32>
    %21 = vector.broadcast %2 : vector<1x32xf32> to vector<16x32xf32>
    %22 = arith.addf %20, %21 : vector<16x32xf32>
    %c0_9 = arith.constant 0 : index
    %c0_10 = arith.constant 0 : index
    %23 = vector.load %arg4[%c0_9, %c0_10] : memref<32x64xf32, #tpu.memory_space<vmem>>, vector<32x64xf32>
    %c0_11 = arith.constant 0 : index
    %c0_12 = arith.constant 0 : index
    %24 = vector.load %arg5[%c0_11, %c0_12] : memref<1x64xf32, #tpu.memory_space<vmem>>, vector<1x64xf32>
    %cst_13 = arith.constant dense<0.000000e+00> : vector<16x64xf32>
    %25 = tpu.matmul %22, %23, %cst_13 {dimension_numbers = #tpu.dot_dimension_numbers<[1], [0], [0], [1], [0, 0, 1, 1], [], []>, precision = #tpu.contract_precision<fp32>} : vector<16x32xf32>, vector<32x64xf32>, vector<16x64xf32> -> vector<16x64xf32>
    %26 = vector.broadcast %24 : vector<1x64xf32> to vector<16x64xf32>
    %27 = arith.addf %25, %26 : vector<16x64xf32>
    %28 = arith.mulf %27, %27 : vector<16x64xf32>
    %29 = arith.mulf %27, %28 : vector<16x64xf32>
    %cst_14 = arith.constant 4.471500e-02 : f32
    %30 = vector.broadcast %cst_14 : f32 to vector<16x64xf32>
    %31 = arith.mulf %30, %29 : vector<16x64xf32>
    %32 = arith.addf %27, %31 : vector<16x64xf32>
    %cst_15 = arith.constant 0.797884583 : f32
    %33 = vector.broadcast %cst_15 : f32 to vector<16x64xf32>
    %34 = arith.mulf %33, %32 : vector<16x64xf32>
    %35 = math.tanh %34 : vector<16x64xf32>
    %cst_16 = arith.constant 1.000000e+00 : f32
    %36 = vector.broadcast %cst_16 : f32 to vector<16x64xf32>
    %37 = arith.addf %36, %35 : vector<16x64xf32>
    %cst_17 = arith.constant 5.000000e-01 : f32
    %38 = vector.broadcast %cst_17 : f32 to vector<16x64xf32>
    %39 = arith.mulf %38, %37 : vector<16x64xf32>
    %40 = arith.mulf %27, %39 : vector<16x64xf32>
    %c0_18 = arith.constant 0 : index
    %c0_19 = arith.constant 0 : index
    %41 = vector.load %arg6[%c0_18, %c0_19] : memref<16x64xf32, #tpu.memory_space<vmem>>, vector<16x64xf32>
    tpu.vector_store %arg6[%c0_18, %c0_19], %40 {strides = array<i32>} : memref<16x64xf32, #tpu.memory_space<vmem>>, vector<16x64xf32>,
    return
  }
  func.func @transform_0(%arg0: i32) -> (i32, i32) {
    %c0_i32 = arith.constant 0 : i32
    %c0_i32_0 = arith.constant 0 : i32
    return %arg0, %c0_i32 : i32, i32
  }
  func.func @transform_1(%arg0: i32) -> (i32, i32) {
    %c0_i32 = arith.constant 0 : i32
    %c0_i32_0 = arith.constant 0 : i32
    %c0_i32_1 = arith.constant 0 : i32
    return %c0_i32, %c0_i32_0 : i32, i32
  }
  func.func @transform_2(%arg0: i32) -> (i32, i32) {
    %c0_i32 = arith.constant 0 : i32
    %c0_i32_0 = arith.constant 0 : i32
    %c0_i32_1 = arith.constant 0 : i32
    return %c0_i32, %c0_i32_0 : i32, i32
  }
  func.func @transform_3(%arg0: i32) -> (i32, i32) {
    %c0_i32 = arith.constant 0 : i32
    %c0_i32_0 = arith.constant 0 : i32
    %c0_i32_1 = arith.constant 0 : i32
    return %c0_i32, %c0_i32_0 : i32, i32
  }
  func.func @transform_4(%arg0: i32) -> (i32, i32) {
    %c0_i32 = arith.constant 0 : i32
    %c0_i32_0 = arith.constant 0 : i32
    %c0_i32_1 = arith.constant 0 : i32
    return %c0_i32, %c0_i32_0 : i32, i32
  }
  func.func @transform_5(%arg0: i32) -> (i32, i32) {
    %c0_i32 = arith.constant 0 : i32
    %c0_i32_0 = arith.constant 0 : i32
    return %arg0, %c0_i32 : i32, i32
  }
}

</mosaic_0001>

<llo_original>
// kernel: tpu_custom_call.1
$region0: #{tpu_custom_call.1}
  #allocation0 [shape = 'u32[]', space=smem, size = 0x4, offset = 0x4, fixed_abs, tag = 'smem constant byte address 0x4 - core index']
  #allocation1 [shape = 'u32[144,128]{1,0:T(1,128)}', space=vmem, size = 0x12000, scoped, tag = 'internal scratch']
  %s0 = inlined_call_operand.hbm [shape: f32[16,32], index: 0, kind: input, shape index: {}]
  %s1 = inlined_call_operand.vmem [shape: f32[1,32], index: 1, kind: input, shape index: {}]
  %s2 = inlined_call_operand.vmem [shape: f32[1,32], index: 2, kind: input, shape index: {}]
  %s3 = inlined_call_operand.hbm [shape: f32[32,64], index: 3, kind: input, shape index: {}]
  %s4 = inlined_call_operand.vmem [shape: f32[1,64], index: 4, kind: input, shape index: {}]
  %s5 = inlined_call_operand.hbm [shape: f32[16,64], index: 5, kind: output, shape index: {}]
  %s6 = sld [smem:[#allocation0]]
  $region38: #{tpu_custom_call.1} parent=0
    _
  %s8 = ssub.s32 1, %s6
  %s9 = scalar_select 0, %s8, %s6
  $region1: #{tpu_custom_call.1} parent=0
    #allocation2 [shape = 'u8[8192]{0}', space=vmem, size = 0x2000, scoped, tag = 'input window, operand 0, single buffered']
    #allocation3 [shape = 's32[1]{0}', space=sflag, size = 0x4, scoped, tag = 'scoped memory for tpu_custom_call.1']
    #allocation4 [shape = 's32[1]{0}', space=sflag, size = 0x4, scoped, tag = 'scoped memory for tpu_custom_call.1']
    #allocation5 [shape = 'u8[16384]{0}', space=vmem, size = 0x4000, scoped, tag = 'input window, operand 3, single buffered']
    #allocation6 [shape = 's32[1]{0}', space=sflag, size = 0x4, scoped, tag = 'scoped memory for tpu_custom_call.1']
    #allocation7 [shape = 'u8[8192]{0}', space=vmem, size = 0x2000, scoped, tag = 'output window, operand 0, single buffered']
    %10 = vsyncpa [#allocation3], 0
    %11 = vsyncpa [#allocation6], 0
    %12 = vsyncpa [#allocation4], 0
    // Predicated region
    $region2: #{tpu_custom_call.1} parent=1 // pred_check
      _
    $region3: #{tpu_custom_call.1} parent=1 // pred_check_branch
      %14 = sbr.rel (0) target = $region5
    $region4: #{tpu_custom_call.1} parent=1 // pred_region
      %s16 = ssub.s32 256, 256
      %17 = vsyncadd [#allocation3], %s16
      %s18 = sshll.u32 [#allocation2], 4
      %s19 = int_to_ptr.vmem [resolvable:$true] %s18
      %24 = dma.hbm_to_vmem [thread:$0]  %s0, 256, %s19, [#allocation3], 128, 128, 8
    $region5: #{tpu_custom_call.1} parent=1 // pred_fallthru
      _
    // Predicated region
    $region6: #{tpu_custom_call.1} parent=1 // pred_check
      _
    $region7: #{tpu_custom_call.1} parent=1 // pred_check_branch
      %26 = sbr.rel (0) target = $region9
    $region8: #{tpu_custom_call.1} parent=1 // pred_region
      _
    $region9: #{tpu_custom_call.1} parent=1 // pred_fallthru
      _
    // Predicated region
    $region10: #{tpu_custom_call.1} parent=1 // pred_check
      _
    $region11: #{tpu_custom_call.1} parent=1 // pred_check_branch
      %28 = sbr.rel (0) target = $region13
    $region12: #{tpu_custom_call.1} parent=1 // pred_region
      _
    $region13: #{tpu_custom_call.1} parent=1 // pred_fallthru
      _
    // Predicated region
    $region14: #{tpu_custom_call.1} parent=1 // pred_check
      _
    $region15: #{tpu_custom_call.1} parent=1 // pred_check_branch
      %30 = sbr.rel (0) target = $region17
    $region16: #{tpu_custom_call.1} parent=1 // pred_region
      %s32 = ssub.s32 512, 512
      %33 = vsyncadd [#allocation6], %s32
      %s34 = sshll.u32 [#allocation5], 4
      %s35 = int_to_ptr.vmem [resolvable:$true] %s34
      %40 = dma.hbm_to_vmem [thread:$0]  %s3, 512, %s35, [#allocation6], 128, 128, 8
    $region17: #{tpu_custom_call.1} parent=1 // pred_fallthru
      _
    // Predicated region
    $region18: #{tpu_custom_call.1} parent=1 // pred_check
      _
    $region19: #{tpu_custom_call.1} parent=1 // pred_check_branch
      %42 = sbr.rel (0) target = $region21
    $region20: #{tpu_custom_call.1} parent=1 // pred_region
      _
    $region21: #{tpu_custom_call.1} parent=1 // pred_fallthru
      _
    // Predicated region
    $region22: #{tpu_custom_call.1} parent=1 // pred_check
      _
    $region23: #{tpu_custom_call.1} parent=1 // pred_check_branch
      %44 = sbr.rel (0) target = $region25
    $region24: #{tpu_custom_call.1} parent=1 // pred_region
      %45 = dma.done [#allocation3], 256
    $region25: #{tpu_custom_call.1} parent=1 // pred_fallthru
      _
    // Predicated region
    $region26: #{tpu_custom_call.1} parent=1 // pred_check
      _
    $region27: #{tpu_custom_call.1} parent=1 // pred_check_branch
      %47 = sbr.rel (0) target = $region29
    $region28: #{tpu_custom_call.1} parent=1 // pred_region
      %48 = dma.done [#allocation6], 512
    $region29: #{tpu_custom_call.1} parent=1 // pred_fallthru
      _
    %v49 = vld [vmem:[#allocation2] sm:$0xff]
    %v50 = vld [vmem:[#allocation2 + $0x8] sm:$0xff]
    %v51 = vld [vmem:[%s1] sm:$0x1]
    %v52 = vld [vmem:[%s2] sm:$0x1]
    %vm53 = vcmask 261120
    %v54 = vsel %vm53, %v49, 0.0
    %55 = vadd.xlane.f32.xlu0 %v54
    %v56 = vpop.xlane.xlu0 %55
    %v57 = vsel %vm53, %v50, 0.0
    %58 = vadd.xlane.f32.xlu0 %v57
    %v59 = vpop.xlane.xlu0 %58
    %v60 = vrcp.pop 32.0
    %v61 = vmul.f32 %v56, %v60
    %v62 = vmul.f32 %v59, %v60
    %v63 = vsub.f32 %v49, %v61
    %v64 = vsub.f32 %v50, %v62
    %v65 = vmul.f32 %v63, %v63
    %v66 = vmul.f32 %v64, %v64
    %v67 = vsel %vm53, %v65, 0.0
    %68 = vadd.xlane.f32.xlu0 %v67
    %v69 = vpop.xlane.xlu0 %68
    %v70 = vsel %vm53, %v66, 0.0
    %71 = vadd.xlane.f32.xlu0 %v70
    %v72 = vpop.xlane.xlu0 %71
    %v73 = vmul.f32 %v69, %v60
    %v74 = vmul.f32 %v72, %v60
    %v75 = vadd.f32 %v73, 1e-05
    %v76 = vadd.f32 %v74, 1e-05
    %v77 = vrsqrt.pop %v75
    %v78 = vrsqrt.pop %v76
    %v79 = vmul.f32 %v63, %v77
    %v80 = vmul.f32 %v64, %v78
    %v82 = vlaneseq
    %v83 = vshrl.u32 %v82, 7
    %v84 = vsub.s32 0, %v83
    %v85 = vrot.slane %v51, %v84
    %v87 = vmul.f32 %v79, %v85
    %v88 = vmul.f32 %v80, %v85
    %v90 = vlaneseq
    %v91 = vshrl.u32 %v90, 7
    %v92 = vsub.s32 0, %v91
    %v93 = vrot.slane %v52, %v92
    %v95 = vadd.f32 %v87, %v93
    %v96 = vadd.f32 %v88, %v93
    %v97 = vld [vmem:[#allocation5] sm:$0xff]
    %v98 = vld [vmem:[#allocation5 + $0x8] sm:$0xff]
    %v99 = vld [vmem:[#allocation5 + $0x10] sm:$0xff]
    %v100 = vld [vmem:[#allocation5 + $0x18] sm:$0xff]
    %v101 = vld [vmem:[%s4] sm:$0x1]
    %v103 = vlaneseq
    %v104 = vshrl.u32 %v103, 7
    %v105 = vsub.s32 0, %v104
    %v106 = vrot.slane %v101, %v105
    %v109 = vsel %vm53, %v95, 0
    %v112 = vsel %vm53, %v96, 0
    %114 = vmatprep.subr.mxu0 0.0
    %v115 = vand.u32 %v97, 4294901760
    %116 = vmatpush1.msra.mxu0 %v115
    %117 = vmatprep.subr.mxu0 0.0
    %v118 = vand.u32 %v98, 4294901760
    %119 = vmatpush1.msra.mxu0 %v118
    %120 = vmatprep.subr.mxu0 0.0
    %v121 = vand.u32 %v99, 4294901760
    %122 = vmatpush1.msra.mxu0 %v121
    %123 = vmatprep.subr.mxu0 0.0
    %v124 = vand.u32 %v100, 4294901760
    %125 = vmatpush1.msra.mxu0 %v124
    %126 = vmatprep.subr.mxu0 0.0
    %127 = vmatpush1.msra.mxu0 0.0
    %128 = vmatprep.subr.mxu0 0.0
    %129 = vmatpush1.msra.mxu0 0.0
    %130 = vmatprep.subr.mxu0 0.0
    %131 = vmatpush1.msra.mxu0 0.0
    %132 = vmatprep.subr.mxu0 0.0
    %133 = vmatpush1.msra.mxu0 0.0
    %134 = vmatprep.subr.mxu0 0.0
    %135 = vmatpush1.msra.mxu0 0.0
    %136 = vmatprep.subr.mxu0 0.0
    %137 = vmatpush1.msra.mxu0 0.0
    %138 = vmatprep.subr.mxu0 0.0
    %139 = vmatpush1.msra.mxu0 0.0
    %140 = vmatprep.subr.mxu0 0.0
    %141 = vmatpush1.msra.mxu0 0.0
    %142 = vmatprep.subr.mxu0 0.0
    %143 = vmatpush1.msra.mxu0 0.0
    %144 = vmatprep.subr.mxu0 0.0
    %145 = vmatpush1.msra.mxu0 0.0
    %146 = vmatprep.subr.mxu0 0.0
    %147 = vmatpush1.msra.mxu0 0.0
    %148 = vmatprep.subr.mxu0 0.0
    %149 = vmatpush1.msra.mxu0 0.0
    %150 = vmatprep.subr.mxu0 0.0
    %151 = vmatpush1.msra.mxu0 0.0
    %152 = vmatprep.subr.mxu0 0.0
    %153 = vmatpush1.msra.mxu0 0.0
    %154 = vmatprep.subr.mxu0 0.0
    %155 = vmatpush1.msra.mxu0 0.0
    %156 = vmatprep.subr.mxu0 0.0
    %157 = vmatpush1.msra.mxu0 0.0
    %158 = vmatprep.subr.mxu0 0.0
    %159 = vmatpush1.msra.mxu0 0.0
    %160 = vmatprep.subr.mxu0 0.0
    %161 = vmatpush1.msra.mxu0 0.0
    %162 = vmatprep.subr.mxu0 0.0
    %163 = vmatpush1.msra.mxu0 0.0
    %164 = vmatprep.subr.mxu0 0.0
    %165 = vmatpush1.msra.mxu0 0.0
    %166 = vmatprep.subr.mxu0 0.0
    %167 = vmatpush1.msra.mxu0 0.0
    %168 = vmatprep.subr.mxu0 0.0
    %169 = vmatpush1.msra.mxu0 0.0
    %170 = vmatprep.subr.mxu0 0.0
    %171 = vmatpush1.msra.mxu0 0.0
    %172 = vmatprep.subr.mxu0 0.0
    %173 = vmatpush1.msra.mxu0 0.0
    %174 = vmatprep.subr.mxu0 0.0
    %175 = vmatpush1.msra.mxu0 0.0
    %176 = vmatprep.subr.mxu0 0.0
    %177 = vmatpush1.msra.mxu0 0.0
    %178 = vmatprep.subr.mxu0 0.0
    %179 = vmatpush1.msra.mxu0 0.0
    %180 = vmatprep.subr.mxu0 0.0
    %181 = vmatpush1.msra.mxu0 0.0
    %182 = vmatprep.mubr.f32.mxu0 0.0
    %v183 = vand.u32 %v109, 4294901760
    %v184 = vsub.f32 %v109, %v183
    %v185 = vand.u32 %v184, 4294901760
    %v186 = vsub.f32 %v184, %v185
    %v187 = vand.u32 %v186, 4294901760
    %188 = vmatmul.mubr.f32.gmra.mrb[0].mxu0 %v187
    %v189 = vpop.f32.mrb[0].mxu0
    %v190 = vadd.f32 %v106, %v189
    %v191 = vpop.f32.mrb[0].mxu0
    %192 = vmatprep.mubr.f32.mxu0 0.0
    %v193 = vand.u32 %v112, 4294901760
    %v194 = vsub.f32 %v112, %v193
    %v195 = vand.u32 %v194, 4294901760
    %v196 = vsub.f32 %v194, %v195
    %v197 = vand.u32 %v196, 4294901760
    %198 = vmatmul.mubr.f32.gmra.mrb[0].mxu0 %v197
    %v199 = vpop.f32.mrb[0].mxu0
    %v200 = vadd.f32 %v106, %v199
    %v201 = vpop.f32.mrb[0].mxu0
    %202 = vdwg.mxu0
    %203 = vmatprep.subr.mxu0 0.0
    %v204 = vand.u32 %v97, 4294901760
    %v205 = vsub.f32 %v97, %v204
    %v206 = vand.u32 %v205, 4294901760
    %v207 = vsub.f32 %v205, %v206
    %v208 = vand.u32 %v207, 4294901760
    %209 = vmatpush1.msra.mxu0 %v208
    %210 = vmatprep.subr.mxu0 0.0
    %v211 = vand.u32 %v98, 4294901760
    %v212 = vsub.f32 %v98, %v211
    %v213 = vand.u32 %v212, 4294901760
    %v214 = vsub.f32 %v212, %v213
    %v215 = vand.u32 %v214, 4294901760
    %216 = vmatpush1.msra.mxu0 %v215
    %217 = vmatprep.subr.mxu0 0.0
    %v218 = vand.u32 %v99, 4294901760
    %v219 = vsub.f32 %v99, %v218
    %v220 = vand.u32 %v219, 4294901760
    %v221 = vsub.f32 %v219, %v220
    %v222 = vand.u32 %v221, 4294901760
    %223 = vmatpush1.msra.mxu0 %v222
    %224 = vmatprep.subr.mxu0 0.0
    %v225 = vand.u32 %v100, 4294901760
    %v226 = vsub.f32 %v100, %v225
    %v227 = vand.u32 %v226, 4294901760
    %v228 = vsub.f32 %v226, %v227
    %v229 = vand.u32 %v228, 4294901760
    %230 = vmatpush1.msra.mxu0 %v229
    %231 = vmatprep.subr.mxu0 0.0
    %232 = vmatpush1.msra.mxu0 0.0
    %233 = vmatprep.subr.mxu0 0.0
    %234 = vmatpush1.msra.mxu0 0.0
    %235 = vmatprep.subr.mxu0 0.0
    %236 = vmatpush1.msra.mxu0 0.0
    %237 = vmatprep.subr.mxu0 0.0
    %238 = vmatpush1.msra.mxu0 0.0
    %239 = vmatprep.subr.mxu0 0.0
    %240 = vmatpush1.msra.mxu0 0.0
    %241 = vmatprep.subr.mxu0 0.0
    %242 = vmatpush1.msra.mxu0 0.0
    %243 = vmatprep.subr.mxu0 0.0
    %244 = vmatpush1.msra.mxu0 0.0
    %245 = vmatprep.subr.mxu0 0.0
    %246 = vmatpush1.msra.mxu0 0.0
    %247 = vmatprep.subr.mxu0 0.0
    %248 = vmatpush1.msra.mxu0 0.0
    %249 = vmatprep.subr.mxu0 0.0
    %250 = vmatpush1.msra.mxu0 0.0
    %251 = vmatprep.subr.mxu0 0.0
    %252 = vmatpush1.msra.mxu0 0.0
    %253 = vmatprep.subr.mxu0 0.0
    %254 = vmatpush1.msra.mxu0 0.0
    %255 = vmatprep.subr.mxu0 0.0
    %256 = vmatpush1.msra.mxu0 0.0
    %257 = vmatprep.subr.mxu0 0.0
    %258 = vmatpush1.msra.mxu0 0.0
    %259 = vmatprep.subr.mxu0 0.0
    %260 = vmatpush1.msra.mxu0 0.0
    %261 = vmatprep.subr.mxu0 0.0
    %262 = vmatpush1.msra.mxu0 0.0
    %263 = vmatprep.subr.mxu0 0.0
    %264 = vmatpush1.msra.mxu0 0.0
    %265 = vmatprep.subr.mxu0 0.0
    %266 = vmatpush1.msra.mxu0 0.0
    %267 = vmatprep.subr.mxu0 0.0
    %268 = vmatpush1.msra.mxu0 0.0
    %269 = vmatprep.subr.mxu0 0.0
    %270 = vmatpush1.msra.mxu0 0.0
    %271 = vmatprep.subr.mxu0 0.0
    %272 = vmatpush1.msra.mxu0 0.0
    %273 = vmatprep.subr.mxu0 0.0
    %274 = vmatpush1.msra.mxu0 0.0
    %275 = vmatprep.subr.mxu0 0.0
    %276 = vmatpush1.msra.mxu0 0.0
    %277 = vmatprep.subr.mxu0 0.0
    %278 = vmatpush1.msra.mxu0 0.0
    %279 = vmatprep.subr.mxu0 0.0
    %280 = vmatpush1.msra.mxu0 0.0
    %281 = vmatprep.subr.mxu0 0.0
    %282 = vmatpush1.msra.mxu0 0.0
    %283 = vmatprep.subr.mxu0 0.0
    %284 = vmatpush1.msra.mxu0 0.0
    %285 = vmatprep.subr.mxu0 0.0
    %286 = vmatpush1.msra.mxu0 0.0
    %287 = vmatprep.mubr.f32.mxu0 0.0
    %v288 = vand.u32 %v109, 4294901760
    %289 = vmatmul.mubr.f32.gmra.mrb[0].mxu0 %v288
    %v290 = vpop.f32.mrb[0].mxu0
    %v291 = vadd.f32 %v190, %v290
    %v292 = vpop.f32.mrb[0].mxu0
    %293 = vmatprep.mubr.f32.mxu0 0.0
    %v294 = vand.u32 %v112, 4294901760
    %295 = vmatmul.mubr.f32.gmra.mrb[0].mxu0 %v294
    %v296 = vpop.f32.mrb[0].mxu0
    %v297 = vadd.f32 %v200, %v296
    %v298 = vpop.f32.mrb[0].mxu0
    %299 = vdwg.mxu0
    %300 = vmatprep.subr.mxu0 0.0
    %v301 = vand.u32 %v97, 4294901760
    %v302 = vsub.f32 %v97, %v301
    %303 = vmatpush1.msra.mxu0 %v302
    %304 = vmatprep.subr.mxu0 0.0
    %v305 = vand.u32 %v98, 4294901760
    %v306 = vsub.f32 %v98, %v305
    %307 = vmatpush1.msra.mxu0 %v306
    %308 = vmatprep.subr.mxu0 0.0
    %v309 = vand.u32 %v99, 4294901760
    %v310 = vsub.f32 %v99, %v309
    %311 = vmatpush1.msra.mxu0 %v310
    %312 = vmatprep.subr.mxu0 0.0
    %v313 = vand.u32 %v100, 4294901760
    %v314 = vsub.f32 %v100, %v313
    %315 = vmatpush1.msra.mxu0 %v314
    %316 = vmatprep.subr.mxu0 0.0
    %317 = vmatpush1.msra.mxu0 0.0
    %318 = vmatprep.subr.mxu0 0.0
    %319 = vmatpush1.msra.mxu0 0.0
    %320 = vmatprep.subr.mxu0 0.0
    %321 = vmatpush1.msra.mxu0 0.0
    %322 = vmatprep.subr.mxu0 0.0
    %323 = vmatpush1.msra.mxu0 0.0
    %324 = vmatprep.subr.mxu0 0.0
    %325 = vmatpush1.msra.mxu0 0.0
    %326 = vmatprep.subr.mxu0 0.0
    %327 = vmatpush1.msra.mxu0 0.0
    %328 = vmatprep.subr.mxu0 0.0
    %329 = vmatpush1.msra.mxu0 0.0
    %330 = vmatprep.subr.mxu0 0.0
    %331 = vmatpush1.msra.mxu0 0.0
    %332 = vmatprep.subr.mxu0 0.0
    %333 = vmatpush1.msra.mxu0 0.0
    %334 = vmatprep.subr.mxu0 0.0
    %335 = vmatpush1.msra.mxu0 0.0
    %336 = vmatprep.subr.mxu0 0.0
    %337 = vmatpush1.msra.mxu0 0.0
    %338 = vmatprep.subr.mxu0 0.0
    %339 = vmatpush1.msra.mxu0 0.0
    %340 = vmatprep.subr.mxu0 0.0
    %341 = vmatpush1.msra.mxu0 0.0
    %342 = vmatprep.subr.mxu0 0.0
    %343 = vmatpush1.msra.mxu0 0.0
    %344 = vmatprep.subr.mxu0 0.0
    %345 = vmatpush1.msra.mxu0 0.0
    %346 = vmatprep.subr.mxu0 0.0
    %347 = vmatpush1.msra.mxu0 0.0
    %348 = vmatprep.subr.mxu0 0.0
    %349 = vmatpush1.msra.mxu0 0.0
    %350 = vmatprep.subr.mxu0 0.0
    %351 = vmatpush1.msra.mxu0 0.0
    %352 = vmatprep.subr.mxu0 0.0
    %353 = vmatpush1.msra.mxu0 0.0
    %354 = vmatprep.subr.mxu0 0.0
    %355 = vmatpush1.msra.mxu0 0.0
    %356 = vmatprep.subr.mxu0 0.0
    %357 = vmatpush1.msra.mxu0 0.0
    %358 = vmatprep.subr.mxu0 0.0
    %359 = vmatpush1.msra.mxu0 0.0
    %360 = vmatprep.subr.mxu0 0.0
    %361 = vmatpush1.msra.mxu0 0.0
    %362 = vmatprep.subr.mxu0 0.0
    %363 = vmatpush1.msra.mxu0 0.0
    %364 = vmatprep.subr.mxu0 0.0
    %365 = vmatpush1.msra.mxu0 0.0
    %366 = vmatprep.subr.mxu0 0.0
    %367 = vmatpush1.msra.mxu0 0.0
    %368 = vmatprep.subr.mxu0 0.0
    %369 = vmatpush1.msra.mxu0 0.0
    %370 = vmatprep.subr.mxu0 0.0
    %371 = vmatpush1.msra.mxu0 0.0
    %372 = vmatprep.mubr.f32.mxu0 0.0
    %v373 = vand.u32 %v109, 4294901760
    %v374 = vsub.f32 %v109, %v373
    %375 = vmatmul.mubr.f32.gmra.mrb[0].mxu0 %v374
    %v376 = vpop.f32.mrb[0].mxu0
    %v377 = vadd.f32 %v291, %v376
    %v378 = vpop.f32.mrb[0].mxu0
    %379 = vmatprep.mubr.f32.mxu0 0.0
    %v380 = vand.u32 %v112, 4294901760
    %v381 = vsub.f32 %v112, %v380
    %382 = vmatmul.mubr.f32.gmra.mrb[0].mxu0 %v381
    %v383 = vpop.f32.mrb[0].mxu0
    %v384 = vadd.f32 %v297, %v383
    %v385 = vpop.f32.mrb[0].mxu0
    %386 = vdwg.mxu0
    %387 = vmatprep.subr.mxu0 0.0
    %v388 = vand.u32 %v97, 4294901760
    %389 = vmatpush1.msra.mxu0 %v388
    %390 = vmatprep.subr.mxu0 0.0
    %v391 = vand.u32 %v98, 4294901760
    %392 = vmatpush1.msra.mxu0 %v391
    %393 = vmatprep.subr.mxu0 0.0
    %v394 = vand.u32 %v99, 4294901760
    %395 = vmatpush1.msra.mxu0 %v394
    %396 = vmatprep.subr.mxu0 0.0
    %v397 = vand.u32 %v100, 4294901760
    %398 = vmatpush1.msra.mxu0 %v397
    %399 = vmatprep.subr.mxu0 0.0
    %400 = vmatpush1.msra.mxu0 0.0
    %401 = vmatprep.subr.mxu0 0.0
    %402 = vmatpush1.msra.mxu0 0.0
    %403 = vmatprep.subr.mxu0 0.0
    %404 = vmatpush1.msra.mxu0 0.0
    %405 = vmatprep.subr.mxu0 0.0
    %406 = vmatpush1.msra.mxu0 0.0
    %407 = vmatprep.subr.mxu0 0.0
    %408 = vmatpush1.msra.mxu0 0.0
    %409 = vmatprep.subr.mxu0 0.0
    %410 = vmatpush1.msra.mxu0 0.0
    %411 = vmatprep.subr.mxu0 0.0
    %412 = vmatpush1.msra.mxu0 0.0
    %413 = vmatprep.subr.mxu0 0.0
    %414 = vmatpush1.msra.mxu0 0.0
    %415 = vmatprep.subr.mxu0 0.0
    %416 = vmatpush1.msra.mxu0 0.0
    %417 = vmatprep.subr.mxu0 0.0
    %418 = vmatpush1.msra.mxu0 0.0
    %419 = vmatprep.subr.mxu0 0.0
    %420 = vmatpush1.msra.mxu0 0.0
    %421 = vmatprep.subr.mxu0 0.0
    %422 = vmatpush1.msra.mxu0 0.0
    %423 = vmatprep.subr.mxu0 0.0
    %424 = vmatpush1.msra.mxu0 0.0
    %425 = vmatprep.subr.mxu0 0.0
    %426 = vmatpush1.msra.mxu0 0.0
    %427 = vmatprep.subr.mxu0 0.0
    %428 = vmatpush1.msra.mxu0 0.0
    %429 = vmatprep.subr.mxu0 0.0
    %430 = vmatpush1.msra.mxu0 0.0
    %431 = vmatprep.subr.mxu0 0.0
    %432 = vmatpush1.msra.mxu0 0.0
    %433 = vmatprep.subr.mxu0 0.0
    %434 = vmatpush1.msra.mxu0 0.0
    %435 = vmatprep.subr.mxu0 0.0
    %436 = vmatpush1.msra.mxu0 0.0
    %437 = vmatprep.subr.mxu0 0.0
    %438 = vmatpush1.msra.mxu0 0.0
    %439 = vmatprep.subr.mxu0 0.0
    %440 = vmatpush1.msra.mxu0 0.0
    %441 = vmatprep.subr.mxu0 0.0
    %442 = vmatpush1.msra.mxu0 0.0
    %443 = vmatprep.subr.mxu0 0.0
    %444 = vmatpush1.msra.mxu0 0.0
    %445 = vmatprep.subr.mxu0 0.0
    %446 = vmatpush1.msra.mxu0 0.0
    %447 = vmatprep.subr.mxu0 0.0
    %448 = vmatpush1.msra.mxu0 0.0
    %449 = vmatprep.subr.mxu0 0.0
    %450 = vmatpush1.msra.mxu0 0.0
    %451 = vmatprep.subr.mxu0 0.0
    %452 = vmatpush1.msra.mxu0 0.0
    %453 = vmatprep.subr.mxu0 0.0
    %454 = vmatpush1.msra.mxu0 0.0
    %455 = vmatprep.mubr.f32.mxu0 0.0
    %v456 = vand.u32 %v109, 4294901760
    %v457 = vsub.f32 %v109, %v456
    %v458 = vand.u32 %v457, 4294901760
    %459 = vmatmul.mubr.f32.gmra.mrb[0].mxu0 %v458
    %v460 = vpop.f32.mrb[0].mxu0
    %v461 = vadd.f32 %v377, %v460
    %v462 = vpop.f32.mrb[0].mxu0
    %463 = vmatprep.mubr.f32.mxu0 0.0
    %v464 = vand.u32 %v112, 4294901760
    %v465 = vsub.f32 %v112, %v464
    %v466 = vand.u32 %v465, 4294901760
    %467 = vmatmul.mubr.f32.gmra.mrb[0].mxu0 %v466
    %v468 = vpop.f32.mrb[0].mxu0
    %v469 = vadd.f32 %v384, %v468
    %v470 = vpop.f32.mrb[0].mxu0
    %471 = vdwg.mxu0
    %472 = vmatprep.subr.mxu0 0.0
    %v473 = vand.u32 %v97, 4294901760
    %v474 = vsub.f32 %v97, %v473
    %v475 = vand.u32 %v474, 4294901760
    %476 = vmatpush1.msra.mxu0 %v475
    %477 = vmatprep.subr.mxu0 0.0
    %v478 = vand.u32 %v98, 4294901760
    %v479 = vsub.f32 %v98, %v478
    %v480 = vand.u32 %v479, 4294901760
    %481 = vmatpush1.msra.mxu0 %v480
    %482 = vmatprep.subr.mxu0 0.0
    %v483 = vand.u32 %v99, 4294901760
    %v484 = vsub.f32 %v99, %v483
    %v485 = vand.u32 %v484, 4294901760
    %486 = vmatpush1.msra.mxu0 %v485
    %487 = vmatprep.subr.mxu0 0.0
    %v488 = vand.u32 %v100, 4294901760
    %v489 = vsub.f32 %v100, %v488
    %v490 = vand.u32 %v489, 4294901760
    %491 = vmatpush1.msra.mxu0 %v490
    %492 = vmatprep.subr.mxu0 0.0
    %493 = vmatpush1.msra.mxu0 0.0
    %494 = vmatprep.subr.mxu0 0.0
    %495 = vmatpush1.msra.mxu0 0.0
    %496 = vmatprep.subr.mxu0 0.0
    %497 = vmatpush1.msra.mxu0 0.0
    %498 = vmatprep.subr.mxu0 0.0
    %499 = vmatpush1.msra.mxu0 0.0
    %500 = vmatprep.subr.mxu0 0.0
    %501 = vmatpush1.msra.mxu0 0.0
    %502 = vmatprep.subr.mxu0 0.0
    %503 = vmatpush1.msra.mxu0 0.0
    %504 = vmatprep.subr.mxu0 0.0
    %505 = vmatpush1.msra.mxu0 0.0
    %506 = vmatprep.subr.mxu0 0.0
    %507 = vmatpush1.msra.mxu0 0.0
    %508 = vmatprep.subr.mxu0 0.0
    %509 = vmatpush1.msra.mxu0 0.0
    %510 = vmatprep.subr.mxu0 0.0
    %511 = vmatpush1.msra.mxu0 0.0
    %512 = vmatprep.subr.mxu0 0.0
    %513 = vmatpush1.msra.mxu0 0.0
    %514 = vmatprep.subr.mxu0 0.0
    %515 = vmatpush1.msra.mxu0 0.0
    %516 = vmatprep.subr.mxu0 0.0
    %517 = vmatpush1.msra.mxu0 0.0
    %518 = vmatprep.subr.mxu0 0.0
    %519 = vmatpush1.msra.mxu0 0.0
    %520 = vmatprep.subr.mxu0 0.0
    %521 = vmatpush1.msra.mxu0 0.0
    %522 = vmatprep.subr.mxu0 0.0
    %523 = vmatpush1.msra.mxu0 0.0
    %524 = vmatprep.subr.mxu0 0.0
    %525 = vmatpush1.msra.mxu0 0.0
    %526 = vmatprep.subr.mxu0 0.0
    %527 = vmatpush1.msra.mxu0 0.0
    %528 = vmatprep.subr.mxu0 0.0
    %529 = vmatpush1.msra.mxu0 0.0
    %530 = vmatprep.subr.mxu0 0.0
    %531 = vmatpush1.msra.mxu0 0.0
    %532 = vmatprep.subr.mxu0 0.0
    %533 = vmatpush1.msra.mxu0 0.0
    %534 = vmatprep.subr.mxu0 0.0
    %535 = vmatpush1.msra.mxu0 0.0
    %536 = vmatprep.subr.mxu0 0.0
    %537 = vmatpush1.msra.mxu0 0.0
    %538 = vmatprep.subr.mxu0 0.0
    %539 = vmatpush1.msra.mxu0 0.0
    %540 = vmatprep.subr.mxu0 0.0
    %541 = vmatpush1.msra.mxu0 0.0
    %542 = vmatprep.subr.mxu0 0.0
    %543 = vmatpush1.msra.mxu0 0.0
    %544 = vmatprep.subr.mxu0 0.0
    %545 = vmatpush1.msra.mxu0 0.0
    %546 = vmatprep.subr.mxu0 0.0
    %547 = vmatpush1.msra.mxu0 0.0
    %548 = vmatprep.mubr.f32.mxu0 0.0
    %v549 = vand.u32 %v109, 4294901760
    %550 = vmatmul.mubr.f32.gmra.mrb[0].mxu0 %v549
    %v551 = vpop.f32.mrb[0].mxu0
    %v552 = vadd.f32 %v461, %v551
    %v553 = vpop.f32.mrb[0].mxu0
    %554 = vmatprep.mubr.f32.mxu0 0.0
    %v555 = vand.u32 %v112, 4294901760
    %556 = vmatmul.mubr.f32.gmra.mrb[0].mxu0 %v555
    %v557 = vpop.f32.mrb[0].mxu0
    %v558 = vadd.f32 %v469, %v557
    %v559 = vpop.f32.mrb[0].mxu0
    %560 = vdwg.mxu0
    %561 = vmatprep.subr.mxu0 0.0
    %v562 = vand.u32 %v97, 4294901760
    %563 = vmatpush1.msra.mxu0 %v562
    %564 = vmatprep.subr.mxu0 0.0
    %v565 = vand.u32 %v98, 4294901760
    %566 = vmatpush1.msra.mxu0 %v565
    %567 = vmatprep.subr.mxu0 0.0
    %v568 = vand.u32 %v99, 4294901760
    %569 = vmatpush1.msra.mxu0 %v568
    %570 = vmatprep.subr.mxu0 0.0
    %v571 = vand.u32 %v100, 4294901760
    %572 = vmatpush1.msra.mxu0 %v571
    %573 = vmatprep.subr.mxu0 0.0
    %574 = vmatpush1.msra.mxu0 0.0
    %575 = vmatprep.subr.mxu0 0.0
    %576 = vmatpush1.msra.mxu0 0.0
    %577 = vmatprep.subr.mxu0 0.0
    %578 = vmatpush1.msra.mxu0 0.0
    %579 = vmatprep.subr.mxu0 0.0
    %580 = vmatpush1.msra.mxu0 0.0
    %581 = vmatprep.subr.mxu0 0.0
    %582 = vmatpush1.msra.mxu0 0.0
    %583 = vmatprep.subr.mxu0 0.0
    %584 = vmatpush1.msra.mxu0 0.0
    %585 = vmatprep.subr.mxu0 0.0
    %586 = vmatpush1.msra.mxu0 0.0
    %587 = vmatprep.subr.mxu0 0.0
    %588 = vmatpush1.msra.mxu0 0.0
    %589 = vmatprep.subr.mxu0 0.0
    %590 = vmatpush1.msra.mxu0 0.0
    %591 = vmatprep.subr.mxu0 0.0
    %592 = vmatpush1.msra.mxu0 0.0
    %593 = vmatprep.subr.mxu0 0.0
    %594 = vmatpush1.msra.mxu0 0.0
    %595 = vmatprep.subr.mxu0 0.0
    %596 = vmatpush1.msra.mxu0 0.0
    %597 = vmatprep.subr.mxu0 0.0
    %598 = vmatpush1.msra.mxu0 0.0
    %599 = vmatprep.subr.mxu0 0.0
    %600 = vmatpush1.msra.mxu0 0.0
    %601 = vmatprep.subr.mxu0 0.0
    %602 = vmatpush1.msra.mxu0 0.0
    %603 = vmatprep.subr.mxu0 0.0
    %604 = vmatpush1.msra.mxu0 0.0
    %605 = vmatprep.subr.mxu0 0.0
    %606 = vmatpush1.msra.mxu0 0.0
    %607 = vmatprep.subr.mxu0 0.0
    %608 = vmatpush1.msra.mxu0 0.0
    %609 = vmatprep.subr.mxu0 0.0
    %610 = vmatpush1.msra.mxu0 0.0
    %611 = vmatprep.subr.mxu0 0.0
    %612 = vmatpush1.msra.mxu0 0.0
    %613 = vmatprep.subr.mxu0 0.0
    %614 = vmatpush1.msra.mxu0 0.0
    %615 = vmatprep.subr.mxu0 0.0
    %616 = vmatpush1.msra.mxu0 0.0
    %617 = vmatprep.subr.mxu0 0.0
    %618 = vmatpush1.msra.mxu0 0.0
    %619 = vmatprep.subr.mxu0 0.0
    %620 = vmatpush1.msra.mxu0 0.0
    %621 = vmatprep.subr.mxu0 0.0
    %622 = vmatpush1.msra.mxu0 0.0
    %623 = vmatprep.subr.mxu0 0.0
    %624 = vmatpush1.msra.mxu0 0.0
    %625 = vmatprep.subr.mxu0 0.0
    %626 = vmatpush1.msra.mxu0 0.0
    %627 = vmatprep.subr.mxu0 0.0
    %628 = vmatpush1.msra.mxu0 0.0
    %629 = vmatprep.mubr.f32.mxu0 0.0
    %v630 = vand.u32 %v109, 4294901760
    %631 = vmatmul.mubr.f32.gmra.mrb[0].mxu0 %v630
    %v632 = vpop.f32.mrb[0].mxu0
    %v633 = vadd.f32 %v552, %v632
    %v634 = vpop.f32.mrb[0].mxu0
    %635 = vmatprep.mubr.f32.mxu0 0.0
    %v636 = vand.u32 %v112, 4294901760
    %637 = vmatmul.mubr.f32.gmra.mrb[0].mxu0 %v636
    %v638 = vpop.f32.mrb[0].mxu0
    %v639 = vadd.f32 %v558, %v638
    %v640 = vpop.f32.mrb[0].mxu0
    %641 = vdwg.mxu0
    %v642 = vmul.f32 %v633, %v633
    %v643 = vmul.f32 %v639, %v639
    %v644 = vmul.f32 %v633, %v642
    %v645 = vmul.f32 %v639, %v643
    %v646 = vmul.f32 %v644, 0.044715
    %v647 = vmul.f32 %v645, 0.044715
    %v648 = vadd.f32 %v633, %v646
    %v649 = vadd.f32 %v639, %v647
    %v650 = vmul.f32 %v648, 0.7978846
    %v651 = vmul.f32 %v649, 0.7978846
    %v652 = vtanh.pop %v650
    %v653 = vtanh.pop %v651
    %v654 = vadd.f32 %v652, 1.0
    %v655 = vadd.f32 %v653, 1.0
    %v656 = vmul.f32 %v654, 0.5
    %v657 = vmul.f32 %v655, 0.5
    %v658 = vmul.f32 %v633, %v656
    %v659 = vmul.f32 %v639, %v657
    %vm660 = vcmask 523264
    %661 = vst.msk [vmem:[#allocation7] sm:$0xff] %vm660, %v658
    %662 = vst.msk [vmem:[#allocation7 + $0x8] sm:$0xff] %vm660, %v659
    // Predicated region
    $region30: #{tpu_custom_call.1} parent=1 // pred_check
      _
    $region31: #{tpu_custom_call.1} parent=1 // pred_check_branch
      %664 = sbr.rel (0) target = $region33
    $region32: #{tpu_custom_call.1} parent=1 // pred_region
      %s666 = ssub.s32 256, 256
      %667 = vsyncadd [#allocation4], %s666
      %s668 = sshll.u32 [#allocation7], 4
      %s669 = int_to_ptr.vmem [resolvable:$true] %s668
      %674 = dma.vmem_to_hbm [thread:$0]  %s669, 256, %s5, [#allocation4], 128, 128, 8
    $region33: #{tpu_custom_call.1} parent=1 // pred_fallthru
      _
    // Predicated region
    $region34: #{tpu_custom_call.1} parent=1 // pred_check
      _
    $region35: #{tpu_custom_call.1} parent=1 // pred_check_branch
      %676 = sbr.rel (0) target = $region37
    $region36: #{tpu_custom_call.1} parent=1 // pred_region
      %677 = dma.done [#allocation4], 256
    $region37: #{tpu_custom_call.1} parent=1 // pred_fallthru
      _
    %678 = vsyncpa [#allocation3], 1
    %679 = vsyncpa [#allocation6], 1
    %680 = vsyncpa [#allocation4], 1

</llo_original>
